<compile_context>
chip_gen: v7x
topology: tpu7x:2x2x1
jax: 0.10.0
libtpu: 0.0.40
codegen_flags: <defaults>
</compile_context>

<pallas_src>
import jax
import jax.numpy as jnp
from jax import lax
from jax.experimental import pallas as pl
from jax.experimental.pallas import tpu as pltpu


def _ms_cam_kernel(x_ref, gb_ref, w21_ref, b21_ref, w22_ref, out_ref):
    """One grid step = one (batch, spatial-tile) pair.

    x_ref   : (1, C, THW)  input tile (lane axis = spatial)
    gb_ref  : (1, C, 1)    f32, hoisted global-branch logits + bn22 shift (fused bias)
    w21_ref : (I, C) bf16  local 1x1 conv #1 with bn21 scale folded in
    b21_ref : (I, 1) f32   bn21 shift
    w22_ref : (C, I) bf16  local 1x1 conv #2 with bn22 scale folded in
    out_ref : (1, C, THW)
    """
    x = x_ref[0]                                     # (C, THW)
    xb = x.astype(jnp.bfloat16)

    # ---- local branch: scale-folded 1x1 convs on the MXU, bias/relu on VPU ----
    l = jnp.dot(w21_ref[...], xb, preferred_element_type=jnp.float32)      # (I, THW)
    l = jnp.maximum(l + b21_ref[...], 0.0)                                 # bn21 shift + relu
    l = jnp.dot(w22_ref[...], l.astype(jnp.bfloat16),
                preferred_element_type=jnp.float32)                        # (C, THW)

    # ---- gb already carries bn22 shift + global-branch logits: sigmoid gate ----
    att = jax.nn.sigmoid(l + gb_ref[0])              # (C, THW); gb broadcasts on lanes
    out_ref[0] = (x.astype(jnp.float32) * att).astype(out_ref.dtype)


def _fuse_bn(gamma, beta, mean, var, eps=1e-5):
    scale = gamma / jnp.sqrt(var + eps)
    shift = beta - mean * scale
    return scale, shift                              # flat (dim,)


def _vmem_budget():
    """Generation-aware (tile budget, vmem_limit) in bytes."""
    try:
        cap = int(pltpu.get_tpu_info().vmem_capacity_bytes)
    except Exception:
        cap = 64 << 20                               # conservative fallback (v7x per-TC)
    if cap <= (64 << 20):                            # v7x: 64 MiB per TensorCore
        return 18 << 20, 40 << 20
    return 48 << 20, 96 << 20                        # v5e / v6e: 128 MiB parts


def _choose_thw(HW_p, N, C, I, itemsize, budget_bytes):
    """Largest 128-multiple divisor of HW_p that fits the VMEM budget.

    Guarantees no ragged tail tile (thw divides HW_p exactly) and, when N == 1,
    keeps >= 2 spatial tiles so the 'parallel' spatial axis has work for the
    second TensorCore on v7x.
    """
    m = HW_p // 128
    # Per spatial column: x (2 bufs) + out (2 bufs) + f32 l/att temps + bf16 temps.
    per_col = 2 * C * itemsize + 2 * C * 4 + (2 * C + I) * 4 + (2 * C + I) * 2
    max_thw = max(128, min(16384, budget_bytes // max(per_col, 1)))
    best = 128
    for d in range(1, m + 1):
        if m % d:
            continue
        thw = 128 * d
        if thw > max_thw:
            break
        if N < 2 and HW_p >= 256 and HW_p // thw < 2:
            continue                                 # keep >=2 tiles for megacore at N=1
        best = thw
    return best


def ms_cam_pallas(x_nchw, params, out_dtype=None):
    """x_nchw: (N, C, H, W).  Returns (N, C, H, W) in out_dtype (default: input dtype)."""
    N, C, H, W = x_nchw.shape
    HW = H * W
    I = params["w11"].shape[0]                       # interdim
    out_dtype = x_nchw.dtype if out_dtype is None else out_dtype

    x = x_nchw.reshape(N, C, HW)                     # free view, no transpose

    # Fused BN scale/shift for all four BN layers (f32).
    s11, b11 = _fuse_bn(*params["bn11"])
    s12, b12 = _fuse_bn(*params["bn12"])
    s21, b21 = _fuse_bn(*params["bn21"])
    s22, b22 = _fuse_bn(*params["bn22"])

    # ---- global branch hoisted to the wrapper (M=1 work, kept f32) ----
    # TODO(synk): the GAP re-reads x from HBM; a single-pass resident variant is
    # only worthwhile when ~3 copies of C*HW*4 fit the per-generation VMEM budget.
    gap = jnp.mean(x.astype(jnp.float32), axis=-1)                        # (N, C)
    g = jnp.dot(gap, params["w11"].reshape(I, C).T,
                precision=lax.Precision.HIGHEST)                          # (N, I)
    g = jnp.maximum(g * s11[None, :] + b11[None, :], 0.0)                 # bn11 + relu
    g = jnp.dot(g, params["w12"].reshape(C, I).T,
                precision=lax.Precision.HIGHEST)                          # (N, C)
    g = g * s12[None, :] + b12[None, :]                                   # bn12
    # Fuse bn22's shift into the per-batch global logits: one resident bias.
    gb = (g + b22[None, :]).reshape(N, C, 1).astype(jnp.float32)

    # ---- local-branch weights: fold BN scale in f32, then cast to bf16 ----
    w21f = (s21[:, None] * params["w21"].reshape(I, C)).astype(jnp.bfloat16)   # (I, C)
    w22f = (s22[:, None] * params["w22"].reshape(C, I)).astype(jnp.bfloat16)   # (C, I)
    b21c = b21.reshape(I, 1).astype(jnp.float32)

    # ---- pad spatial axis to a multiple of 128 so every tile is lane-dense ----
    HW_p = ((HW + 127) // 128) * 128
    if HW_p != HW:
        x = jnp.pad(x, ((0, 0), (0, 0), (0, HW_p - HW)))

    budget, vmem_limit = _vmem_budget()
    thw = _choose_thw(HW_p, N, C, I, x.dtype.itemsize, budget)
    n_hw = HW_p // thw                               # exact: no ragged tail tile

    full = lambda shape: pl.BlockSpec(shape, lambda n, h: (0,) * len(shape))

    out = pl.pallas_call(
        _ms_cam_kernel,
        out_shape=jax.ShapeDtypeStruct((N, C, HW_p), out_dtype),
        grid_spec=pltpu.PrefetchScalarGridSpec(
            num_scalar_prefetch=0,
            grid=(N, n_hw),
            in_specs=[
                pl.BlockSpec((1, C, thw), lambda n, h: (n, 0, h)),        # x tile
                pl.BlockSpec((1, C, 1), lambda n, h: (n, 0, 0)),          # gb (per batch)
                full((I, C)),                                             # w21 (scale-folded)
                full((I, 1)),                                             # b21
                full((C, I)),                                             # w22 (scale-folded)
            ],
            out_specs=pl.BlockSpec((1, C, thw), lambda n, h: (n, 0, h)),
        ),
        compiler_params=pltpu.CompilerParams(
            dimension_semantics=("parallel", "parallel"),
            vmem_limit_bytes=vmem_limit),
    )(x, gb, w21f, b21c, w22f)

    if HW_p != HW:
        out = out[:, :, :HW]
    return out.reshape(N, C, H, W)


def ms_cam_reference(x_nchw, params):
    """Pure-JAX reference mirroring the PyTorch forward (eval-mode BN)."""
    def bn(y, stats):
        g, b, m, v = stats
        sh = (1, -1, 1, 1)
        return (y - m.reshape(sh)) / jnp.sqrt(v.reshape(sh) + 1e-5) * g.reshape(sh) + b.reshape(sh)

    def conv1x1(y, w):  # w: (O, In, 1, 1)
        O = w.shape[0]
        return jnp.einsum("nchw,oc->nohw", y, w.reshape(O, -1))

    gap = jnp.mean(x_nchw, axis=(2, 3), keepdims=True)
    g = jax.nn.relu(bn(conv1x1(gap, params["w11"]), params["bn11"]))
    g = bn(conv1x1(g, params["w12"]), params["bn12"])
    l = jax.nn.relu(bn(conv1x1(x_nchw, params["w21"]), params["bn21"]))
    l = bn(conv1x1(l, params["w22"]), params["bn22"])
    return x_nchw * jax.nn.sigmoid(g + l)


def make_params(key, C, r):
    I = max(C // r, 1)
    ks = jax.random.split(key, 12)

    def bn_stats(k, dim):
        k1, k2, k3, k4 = jax.random.split(k, 4)
        gamma = 1.0 + 0.1 * jax.random.normal(k1, (dim,), jnp.float32)
        beta = 0.1 * jax.random.normal(k2, (dim,), jnp.float32)
        mean = 0.1 * jax.random.normal(k3, (dim,), jnp.float32)
        var = 1.0 + 0.1 * jax.random.uniform(k4, (dim,), jnp.float32)
        return (gamma, beta, mean, var)

    return {
        "w11": 0.1 * jax.random.normal(ks[0], (I, C, 1, 1), jnp.float32),
        "w12": 0.1 * jax.random.normal(ks[1], (C, I, 1, 1), jnp.float32),
        "w21": 0.1 * jax.random.normal(ks[2], (I, C, 1, 1), jnp.float32),
        "w22": 0.1 * jax.random.normal(ks[3], (C, I, 1, 1), jnp.float32),
        "bn11": bn_stats(ks[4], I),
        "bn12": bn_stats(ks[5], C),
        "bn21": bn_stats(ks[6], I),
        "bn22": bn_stats(ks[7], C),
    }


if __name__ == "__main__":
    N, C, H, W, r = 2, 4, 16, 16, 2
    key = jax.random.PRNGKey(0)
    kx, kp = jax.random.split(key)
    x = jax.random.normal(kx, (N, C, H, W), jnp.float32)
    params = make_params(kp, C, r)

    out = jax.block_until_ready(ms_cam_pallas(x, params))
    ref = jax.block_until_ready(ms_cam_reference(x, params))

    assert out.shape == (N, C, H, W)
    # Local-branch matmuls use bf16 MXU operands (scale folded in f32 first);
    # gate/epilogue math and the global branch remain f32.
    assert jnp.allclose(out, ref, atol=5e-3, rtol=5e-3), "mismatch vs reference"
    print("KERNEL_OK")
</pallas_src>

<mosaic_0001>
module attributes {stable_mosaic.version = 11 : i64} {
  func.func @_ms_cam_kernel(%arg0: i32, %arg1: i32, %arg2: memref<1x4x256xf32, #tpu.memory_space<vmem>>, %arg3: memref<1x4x1xf32, #tpu.memory_space<vmem>>, %arg4: memref<2x4xbf16, #tpu.memory_space<vmem>>, %arg5: memref<2x1xf32, #tpu.memory_space<vmem>>, %arg6: memref<4x2xbf16, #tpu.memory_space<vmem>>, %arg7: memref<1x4x256xf32, #tpu.memory_space<vmem>>) attributes {dimension_semantics = [#tpu.dimension_semantics<parallel>, #tpu.dimension_semantics<parallel>], iteration_bounds = array<i64: 2, 1>, scalar_prefetch = 0 : i64, scratch_operands = 0 : i64, tpu.core_type = #tpu.core_type<tc>, window_params = [{transform_indices = @transform_0, window_bounds = array<i64: 1, 4, 256>}, {transform_indices = @transform_1, window_bounds = array<i64: 1, 4, 1>}, {pipeline_mode = #tpu.pipeline_mode<synchronous>, transform_indices = @transform_2, window_bounds = array<i64: 2, 4>}, {pipeline_mode = #tpu.pipeline_mode<synchronous>, transform_indices = @transform_3, window_bounds = array<i64: 2, 1>}, {pipeline_mode = #tpu.pipeline_mode<synchronous>, transform_indices = @transform_4, window_bounds = array<i64: 4, 2>}, {transform_indices = @transform_5, window_bounds = array<i64: 1, 4, 256>}]} {
    %c0 = arith.constant 0 : index
    %c0_0 = arith.constant 0 : index
    %c0_1 = arith.constant 0 : index
    %0 = vector.load %arg2[%c0, %c0_0, %c0_1] : memref<1x4x256xf32, #tpu.memory_space<vmem>>, vector<1x4x256xf32>
    %1 = vector.shape_cast %0 : vector<1x4x256xf32> to vector<4x256xf32>
    %2 = arith.truncf %1 : vector<4x256xf32> to vector<4x256xbf16>
    %c0_2 = arith.constant 0 : index
    %c0_3 = arith.constant 0 : index
    %3 = vector.load %arg4[%c0_2, %c0_3] : memref<2x4xbf16, #tpu.memory_space<vmem>>, vector<2x4xbf16>
    %cst = arith.constant dense<0.000000e+00> : vector<2x256xf32>
    %4 = tpu.matmul %3, %2, %cst {dimension_numbers = #tpu.dot_dimension_numbers<[1], [0], [0], [1], [0, 0, 1, 1], [], []>} : vector<2x4xbf16>, vector<4x256xbf16>, vector<2x256xf32> -> vector<2x256xf32>
    %c0_4 = arith.constant 0 : index
    %c0_5 = arith.constant 0 : index
    %5 = vector.load %arg5[%c0_4, %c0_5] : memref<2x1xf32, #tpu.memory_space<vmem>>, vector<2x1xf32>
    %6 = vector.broadcast %5 : vector<2x1xf32> to vector<2x256xf32>
    %7 = arith.addf %4, %6 : vector<2x256xf32>
    %cst_6 = arith.constant 0.000000e+00 : f32
    %8 = vector.broadcast %cst_6 : f32 to vector<2x256xf32>
    %9 = arith.maximumf %7, %8 : vector<2x256xf32>
    %c0_7 = arith.constant 0 : index
    %c0_8 = arith.constant 0 : index
    %10 = vector.load %arg6[%c0_7, %c0_8] : memref<4x2xbf16, #tpu.memory_space<vmem>>, vector<4x2xbf16>
    %11 = arith.truncf %9 : vector<2x256xf32> to vector<2x256xbf16>
    %cst_9 = arith.constant dense<0.000000e+00> : vector<4x256xf32>
    %12 = tpu.matmul %10, %11, %cst_9 {dimension_numbers = #tpu.dot_dimension_numbers<[1], [0], [0], [1], [0, 0, 1, 1], [], []>} : vector<4x2xbf16>, vector<2x256xbf16>, vector<4x256xf32> -> vector<4x256xf32>
    %c0_10 = arith.constant 0 : index
    %c0_11 = arith.constant 0 : index
    %c0_12 = arith.constant 0 : index
    %13 = vector.load %arg3[%c0_10, %c0_11, %c0_12] : memref<1x4x1xf32, #tpu.memory_space<vmem>>, vector<1x4x1xf32>
    %14 = vector.shape_cast %13 : vector<1x4x1xf32> to vector<4x1xf32>
    %15 = vector.broadcast %14 : vector<4x1xf32> to vector<4x256xf32>
    %16 = arith.addf %12, %15 : vector<4x256xf32>
    %17 = arith.negf %16 : vector<4x256xf32>
    %18 = math.exp %17 : vector<4x256xf32>
    %cst_13 = arith.constant 1.000000e+00 : f32
    %19 = vector.broadcast %cst_13 : f32 to vector<4x256xf32>
    %20 = arith.addf %19, %18 : vector<4x256xf32>
    %21 = arith.divf %19, %20 : vector<4x256xf32>
    %22 = arith.mulf %1, %21 : vector<4x256xf32>
    %c0_14 = arith.constant 0 : index
    %c0_15 = arith.constant 0 : index
    %c0_16 = arith.constant 0 : index
    %23 = vector.load %arg7[%c0_14, %c0_15, %c0_16] : memref<1x4x256xf32, #tpu.memory_space<vmem>>, vector<1x4x256xf32>
    %24 = vector.shape_cast %23 : vector<1x4x256xf32> to vector<4x256xf32>
    %25 = vector.shape_cast %22 : vector<4x256xf32> to vector<1x4x256xf32>
    tpu.vector_store %arg7[%c0_14, %c0_15, %c0_16], %25 {strides = array<i32>} : memref<1x4x256xf32, #tpu.memory_space<vmem>>, vector<1x4x256xf32>,
    return
  }
  func.func @transform_0(%arg0: i32, %arg1: i32) -> (i32, i32, i32) {
    %c0_i32 = arith.constant 0 : i32
    %c0_i32_0 = arith.constant 0 : i32
    return %arg0, %c0_i32, %arg1 : i32, i32, i32
  }
  func.func @transform_1(%arg0: i32, %arg1: i32) -> (i32, i32, i32) {
    %c0_i32 = arith.constant 0 : i32
    %c0_i32_0 = arith.constant 0 : i32
    %c0_i32_1 = arith.constant 0 : i32
    return %arg0, %c0_i32, %c0_i32_0 : i32, i32, i32
  }
  func.func @transform_2(%arg0: i32, %arg1: i32) -> (i32, i32) {
    %c0_i32 = arith.constant 0 : i32
    %c0_i32_0 = arith.constant 0 : i32
    %c0_i32_1 = arith.constant 0 : i32
    return %c0_i32, %c0_i32_0 : i32, i32
  }
  func.func @transform_3(%arg0: i32, %arg1: i32) -> (i32, i32) {
    %c0_i32 = arith.constant 0 : i32
    %c0_i32_0 = arith.constant 0 : i32
    %c0_i32_1 = arith.constant 0 : i32
    return %c0_i32, %c0_i32_0 : i32, i32
  }
  func.func @transform_4(%arg0: i32, %arg1: i32) -> (i32, i32) {
    %c0_i32 = arith.constant 0 : i32
    %c0_i32_0 = arith.constant 0 : i32
    %c0_i32_1 = arith.constant 0 : i32
    return %c0_i32, %c0_i32_0 : i32, i32
  }
  func.func @transform_5(%arg0: i32, %arg1: i32) -> (i32, i32, i32) {
    %c0_i32 = arith.constant 0 : i32
    %c0_i32_0 = arith.constant 0 : i32
    return %arg0, %c0_i32, %arg1 : i32, i32, i32
  }
}

</mosaic_0001>

<llo_original>
// kernel: tpu_custom_call.1
$region0: #{tpu_custom_call.1}
  #allocation0 [shape = 'u32[]', space=smem, size = 0x4, offset = 0x4, fixed_abs, tag = 'smem constant byte address 0x4 - core index']
  #allocation1 [shape = 'u32[144,128]{1,0:T(1,128)}', space=vmem, size = 0x12000, scoped, tag = 'internal scratch']
  %s0 = inlined_call_operand.vmem [shape: f32[2,4,256], index: 0, kind: input, shape index: {}]
  %s1 = inlined_call_operand.vmem [shape: f32[2,4,1], index: 1, kind: input, shape index: {}]
  %s2 = inlined_call_operand.vmem [shape: bf16[2,4], index: 2, kind: input, shape index: {}]
  %s3 = inlined_call_operand.vmem [shape: f32[2,1], index: 3, kind: input, shape index: {}]
  %s4 = inlined_call_operand.vmem [shape: bf16[4,2], index: 4, kind: input, shape index: {}]
  %s5 = inlined_call_operand.hbm [shape: f32[2,4,256], index: 5, kind: output, shape index: {}]
  %s6 = sld [smem:[#allocation0]]
  $region53: #{tpu_custom_call.1} parent=0
    _
  %s8 = ssub.s32 1, %s6
  %s9 = scalar_select 0, %s8, %s6
  $region1: #{tpu_custom_call.1} parent=0
    #allocation2 [shape = 'u8[8192]{0}', space=vmem, size = 0x2000, scoped, tag = 'output window, operand 0']
    #allocation3 [shape = 's32[2]{0}', space=sflag, size = 0x8, scoped, tag = 'scoped memory for tpu_custom_call.1']
    %10 = vsyncpa [#allocation3], 0
    %s11 = scalar_lea.sflag [#allocation3], 1
    %12 = vsyncpa %s11, 0
    loop: start=0, step=1, limit=4
    $region2: #{tpu_custom_call.1} parent=1 // loop_pre_header
      _
    $region3: #{tpu_custom_call.1} parent=1 // loop_header
      %s14 = sphi 0, %s18
      %p15 = scmp.ge.s32.totalorder %s14, 4
      %s21 = sphi 0, %s33
      %s22 = sphi 0, %s29
      %s23 = sphi 0, %s21
      %s24 = sphi 0, %s22
      %s25 = sphi 0, %s23
      %s26 = sphi 0, %s24
      %s38 = sphi 0, %s40
      %s41 = sphi 0, %s38
      %s42 = sphi 0, %s41
      %s58 = sphi 0, %s42
      %s64 = sphi 0, %s66
      %s67 = sphi 0, %s64
      %s68 = sphi 0, %s67
      %s84 = sphi 0, %s68
      %s88 = sphi 0, %s88
      %s90 = sphi 0, %s88
      %s91 = sphi 0, %s90
      %s105 = sphi 0, %s91
      %s109 = sphi 0, %s109
      %s111 = sphi 0, %s109
      %s112 = sphi 0, %s111
      %s126 = sphi 0, %s112
      %s130 = sphi 0, %s130
      %s132 = sphi 0, %s130
      %s133 = sphi 0, %s132
      %s147 = sphi 0, %s133
      %s155 = sphi 0, %s157
      %s158 = sphi 0, %s155
      %s159 = sphi 0, %s158
      %s175 = sphi 0, %s159
    $region4: #{tpu_custom_call.1} parent=1 // loop_header_branch
      %17 = sbr.rel (%p15) target = $region8
    $region5: #{tpu_custom_call.1} parent=1 // loop_body
      %s19 = ssub.s32 %s14, 1
      %s20 = ssub.s32 %s14, 2
      %s27 = sadd.s32 1, %s22
      %p28 = scmp.ge.s32.totalorder %s27, 1
      %s29 = scalar_select %p28, 0, %s27
      %s30 = sadd.s32 1, %s21
      %s31 = scalar_select %p28, %s30, %s21
      %p32 = scmp.ge.s32.totalorder %s31, 2
      %s33 = scalar_select %p32, 0, %s31
      %s34 = ssub.s32 %s21, %s33
      %s35 = ssub.s32 %s22, %s29
      %s36 = sor.u32 %s34, %s35
      %p37 = scmp.eq.s32.totalorder %s36, 0
      %s39 = sadd.s32 %s38, 1
      %s40 = scalar_select %p37, %s38, %s39
      %p43 = pneg %p37
      %p44 = scmp.eq.s32.totalorder %s14, 1
      %p45 = por %p43, %p44
      %p46 = scmp.ne.s32.totalorder %s38, %s41
      %p47 = scmp.eq.s32.totalorder %s14, 0
      %p48 = por %p46, %p47
      %p49 = scmp.ne.s32.totalorder %s38, %s41
      %p50 = scmp.eq.s32.totalorder %s19, 1
      %p51 = por %p49, %p50
      %p52 = scmp.ne.s32.totalorder %s41, %s42
      %p53 = scmp.eq.s32.totalorder %s19, 0
      %p54 = por %p52, %p53
      %p55 = scmp.ne.s32.totalorder %s41, %s42
      %p56 = scmp.eq.s32.totalorder %s20, 1
      %p57 = por %p55, %p56
      %p59 = scmp.ne.s32.totalorder %s42, %s58
      %p60 = scmp.eq.s32.totalorder %s20, 0
      %p61 = por %p59, %p60
      %s62 = ssub.s32 %s21, %s33
      %p63 = scmp.eq.s32.totalorder %s62, 0
      %s65 = sadd.s32 %s64, 1
      %s66 = scalar_select %p63, %s64, %s65
      %p69 = pneg %p63
      %p70 = scmp.eq.s32.totalorder %s14, 1
      %p71 = por %p69, %p70
      %p72 = scmp.ne.s32.totalorder %s64, %s67
      %p73 = scmp.eq.s32.totalorder %s14, 0
      %p74 = por %p72, %p73
      %p75 = scmp.ne.s32.totalorder %s64, %s67
      %p76 = scmp.eq.s32.totalorder %s19, 1
      %p77 = por %p75, %p76
      %p78 = scmp.ne.s32.totalorder %s67, %s68
      %p79 = scmp.eq.s32.totalorder %s19, 0
      %p80 = por %p78, %p79
      %p81 = scmp.ne.s32.totalorder %s67, %s68
      %p82 = scmp.eq.s32.totalorder %s20, 1
      %p83 = por %p81, %p82
      %p85 = scmp.ne.s32.totalorder %s68, %s84
      %p86 = scmp.eq.s32.totalorder %s20, 0
      %p87 = por %p85, %p86
      %s89 = sadd.s32 %s88, 1
      %p92 = scmp.eq.s32.totalorder %s14, 1
      %p93 = scmp.ne.s32.totalorder %s88, %s90
      %p94 = scmp.eq.s32.totalorder %s14, 0
      %p95 = por %p93, %p94
      %p96 = scmp.ne.s32.totalorder %s88, %s90
      %p97 = scmp.eq.s32.totalorder %s19, 1
      %p98 = por %p96, %p97
      %p99 = scmp.ne.s32.totalorder %s90, %s91
      %p100 = scmp.eq.s32.totalorder %s19, 0
      %p101 = por %p99, %p100
      %p102 = scmp.ne.s32.totalorder %s90, %s91
      %p103 = scmp.eq.s32.totalorder %s20, 1
      %p104 = por %p102, %p103
      %p106 = scmp.ne.s32.totalorder %s91, %s105
      %p107 = scmp.eq.s32.totalorder %s20, 0
      %p108 = por %p106, %p107
      %s110 = sadd.s32 %s109, 1
      %p113 = scmp.eq.s32.totalorder %s14, 1
      %p114 = scmp.ne.s32.totalorder %s109, %s111
      %p115 = scmp.eq.s32.totalorder %s14, 0
      %p116 = por %p114, %p115
      %p117 = scmp.ne.s32.totalorder %s109, %s111
      %p118 = scmp.eq.s32.totalorder %s19, 1
      %p119 = por %p117, %p118
      %p120 = scmp.ne.s32.totalorder %s111, %s112
      %p121 = scmp.eq.s32.totalorder %s19, 0
      %p122 = por %p120, %p121
      %p123 = scmp.ne.s32.totalorder %s111, %s112
      %p124 = scmp.eq.s32.totalorder %s20, 1
      %p125 = por %p123, %p124
      %p127 = scmp.ne.s32.totalorder %s112, %s126
      %p128 = scmp.eq.s32.totalorder %s20, 0
      %p129 = por %p127, %p128
      %s131 = sadd.s32 %s130, 1
      %p134 = scmp.eq.s32.totalorder %s14, 1
      %p135 = scmp.ne.s32.totalorder %s130, %s132
      %p136 = scmp.eq.s32.totalorder %s14, 0
      %p137 = por %p135, %p136
      %p138 = scmp.ne.s32.totalorder %s130, %s132
      %p139 = scmp.eq.s32.totalorder %s19, 1
      %p140 = por %p138, %p139
      %p141 = scmp.ne.s32.totalorder %s132, %s133
      %p142 = scmp.eq.s32.totalorder %s19, 0
      %p143 = por %p141, %p142
      %p144 = scmp.ne.s32.totalorder %s132, %s133
      %p145 = scmp.eq.s32.totalorder %s20, 1
      %p146 = por %p144, %p145
      %p148 = scmp.ne.s32.totalorder %s133, %s147
      %p149 = scmp.eq.s32.totalorder %s20, 0
      %p150 = por %p148, %p149
      %s151 = ssub.s32 %s21, %s33
      %s152 = ssub.s32 %s22, %s29
      %s153 = sor.u32 %s151, %s152
      %p154 = scmp.eq.s32.totalorder %s153, 0
      %s156 = sadd.s32 %s155, 1
      %s157 = scalar_select %p154, %s155, %s156
      %p160 = pneg %p154
      %p161 = scmp.eq.s32.totalorder %s14, 1
      %p162 = por %p160, %p161
      %p163 = scmp.ne.s32.totalorder %s155, %s158
      %p164 = scmp.eq.s32.totalorder %s14, 0
      %p165 = por %p163, %p164
      %p166 = scmp.ne.s32.totalorder %s155, %s158
      %p167 = scmp.eq.s32.totalorder %s19, 1
      %p168 = por %p166, %p167
      %p169 = scmp.ne.s32.totalorder %s158, %s159
      %p170 = scmp.eq.s32.totalorder %s19, 0
      %p171 = por %p169, %p170
      %p172 = scmp.ne.s32.totalorder %s158, %s159
      %p173 = scmp.eq.s32.totalorder %s20, 1
      %p174 = por %p172, %p173
      %p176 = scmp.ne.s32.totalorder %s159, %s175
      %p177 = scmp.eq.s32.totalorder %s20, 0
      %p178 = por %p176, %p177
      %p179 = scmp.le.s32.totalorder 1, %s14
      %p180 = scmp.lt.s32.totalorder %s14, 3
      %p181 = pnand %p179, %p180
      %p182 = pneg %p181
      // Predicated region
      $region9: #{tpu_custom_call.1} parent=5 // pred_check
        _
      $region10: #{tpu_custom_call.1} parent=5 // pred_check_branch
        %184 = sbr.rel (%p181) target = $region12
      $region11: #{tpu_custom_call.1} parent=5 // pred_region
        %s185 = ssub.s32 %s14, 1
        // Predicated region
        $region13: #{tpu_custom_call.1} parent=11 // pred_check
          %p186 = pneg %p101
        $region14: #{tpu_custom_call.1} parent=11 // pred_check_branch
          %188 = sbr.rel (%p186) target = $region16
        $region15: #{tpu_custom_call.1} parent=11 // pred_region
          _
        $region16: #{tpu_custom_call.1} parent=11 // pred_fallthru
          _
        // Predicated region
        $region17: #{tpu_custom_call.1} parent=11 // pred_check
          %p189 = pneg %p122
        $region18: #{tpu_custom_call.1} parent=11 // pred_check_branch
          %191 = sbr.rel (%p189) target = $region20
        $region19: #{tpu_custom_call.1} parent=11 // pred_region
          _
        $region20: #{tpu_custom_call.1} parent=11 // pred_fallthru
          _
        // Predicated region
        $region21: #{tpu_custom_call.1} parent=11 // pred_check
          %p192 = pneg %p143
        $region22: #{tpu_custom_call.1} parent=11 // pred_check_branch
          %194 = sbr.rel (%p192) target = $region24
        $region23: #{tpu_custom_call.1} parent=11 // pred_region
          _
        $region24: #{tpu_custom_call.1} parent=11 // pred_fallthru
          _
      $region12: #{tpu_custom_call.1} parent=5 // pred_fallthru
        _
      %p195 = scmp.lt.s32.totalorder %s14, 2
      // Predicated region
      $region25: #{tpu_custom_call.1} parent=5 // pred_check
        %p196 = pneg %p195
      $region26: #{tpu_custom_call.1} parent=5 // pred_check_branch
        %198 = sbr.rel (%p196) target = $region28
      $region27: #{tpu_custom_call.1} parent=5 // pred_region
        // Predicated region
        $region29: #{tpu_custom_call.1} parent=27 // pred_check
          %p199 = pneg %p48
        $region30: #{tpu_custom_call.1} parent=27 // pred_check_branch
          %201 = sbr.rel (%p199) target = $region32
        $region31: #{tpu_custom_call.1} parent=27 // pred_region
          %s202 = smul.u32 2, %s22
          %p203 = scmp.lt.s32.totalorder %s21, 1
          %s204 = scalar_select %p203, %s21, 1
          %p205 = scmp.lt.s32.totalorder %s202, 1
          %s206 = scalar_select %p205, %s202, 1
          %s207 = smul.addr %s204, 2
          %s208 = sadd.s32 %s206, %s207
          %s209 = smul.addr %s208, 4
          %s210 = scalar_lea.vmem %s0, %s209
          %s211 = smul.u32 2, %s22
        $region32: #{tpu_custom_call.1} parent=27 // pred_fallthru
          _
        // Predicated region
        $region33: #{tpu_custom_call.1} parent=27 // pred_check
          %p212 = pneg %p74
        $region34: #{tpu_custom_call.1} parent=27 // pred_check_branch
          %214 = sbr.rel (%p212) target = $region36
        $region35: #{tpu_custom_call.1} parent=27 // pred_region
          %p215 = scmp.lt.s32.totalorder %s21, 1
          %s216 = scalar_select %p215, %s21, 1
          %s217 = smul.addr %s216, 4
          %s218 = scalar_lea.vmem %s1, %s217
        $region36: #{tpu_custom_call.1} parent=27 // pred_fallthru
          _
      $region28: #{tpu_custom_call.1} parent=5 // pred_fallthru
        _
      %p219 = scmp.le.s32.totalorder 1, %s14
      %p220 = scmp.lt.s32.totalorder %s14, 3
      %p221 = pnand %p219, %p220
      %p222 = pneg %p221
      // Predicated region
      $region37: #{tpu_custom_call.1} parent=5 // pred_check
        _
      $region38: #{tpu_custom_call.1} parent=5 // pred_check_branch
        %224 = sbr.rel (%p221) target = $region40
      $region39: #{tpu_custom_call.1} parent=5 // pred_region
        %s225 = ssub.s32 %s14, 1
        %s226 = smul.u32 2, %s24
        %p227 = scmp.lt.s32.totalorder %s23, 1
        %s228 = scalar_select %p227, %s23, 1
        %p229 = scmp.lt.s32.totalorder %s226, 1
        %s230 = scalar_select %p229, %s226, 1
        %s231 = smul.addr %s228, 2
        %s232 = sadd.s32 %s230, %s231
        %s233 = smul.addr %s232, 4
        %s234 = scalar_lea.vmem %s0, %s233
        %p235 = pneg %p54
        %p236 = pneg %p51
        %p237 = scmp.lt.s32.totalorder %s23, 1
        %s238 = scalar_select %p237, %s23, 1
        %s239 = smul.addr %s238, 4
        %s240 = scalar_lea.vmem %s1, %s239
        %p241 = pneg %p80
        %p242 = pneg %p77
        %p243 = pneg %p101
        %p244 = pneg %p98
        %p245 = pneg %p122
        %p246 = pneg %p119
        %p247 = pneg %p143
        %p248 = pneg %p140
        %p249 = pneg %p171
        %p250 = pneg %p168
        %s251 = sand.u32 %s158, 1
        %s252 = scalar_lea.sflag [#allocation3], %s251
        %s253 = sand.u32 %s158, 1
        %s254 = smul.addr %s253, 8
        %s255 = scalar_lea.vmem [#allocation2], %s254
        %s256 = smul.u32 2, %s24
        %p257 = scmp.lt.s32.totalorder %s23, 1
        %s258 = scalar_select %p257, %s23, 1
        %p259 = scmp.lt.s32.totalorder %s256, 1
        %s260 = scalar_select %p259, %s256, 1
        %s261 = smul.addr %s258, 2
        %s262 = sadd.s32 %s260, %s261
        %s263 = smul.addr %s262, 4
        %s264 = scalar_lea.vmem %s0, %s263
        %s265 = smul.u32 2, %s24
        %p266 = scmp.lt.s32.totalorder %s23, 1
        %s267 = scalar_select %p266, %s23, 1
        %s268 = smul.addr %s267, 4
        %s269 = scalar_lea.vmem %s1, %s268
        %s270 = smul.u32 2, %s24
        %v272 = vld [vmem:[%s264] sm:$0xff]
        %v274 = vcombine.high %v272, %v272
        %v276 = vpack.c.bf16 %v272, %v272
        %v277 = vpack.c.bf16 %v274, %v274
        %v278 = vld [vmem:[%s2] sm:$0x1]
        %v279 = vld [vmem:[%s3] sm:$0x3]
        %281 = vset.pattern.permute.xlu0 0
        %282 = vperm.xlu0 %281, %v279
        %v283 = vpop.permute.xlu0 %282
        %vm285 = vcmask 31744
        %v287 = vsel %vm285, %v278, 0
        %vm289 = vcmask 1041408
        %v291 = vsel %vm289, %v276, 0
        %v294 = vsel %vm289, %v277, 0
        %296 = vmatprep.subr.bf16.mxu0 %v294
        %297 = vmatpush1.bf16.msra.mxu0 %v291
        %298 = vmatprep.subr.bf16.mxu0 0
        %299 = vmatpush1.bf16.msra.mxu0 0
        %300 = vmatprep.subr.bf16.mxu0 0
        %301 = vmatpush1.bf16.msra.mxu0 0
        %302 = vmatprep.subr.bf16.mxu0 0
        %303 = vmatpush1.bf16.msra.mxu0 0
        %304 = vmatprep.subr.bf16.mxu0 0
        %305 = vmatpush1.bf16.msra.mxu0 0
        %306 = vmatprep.subr.bf16.mxu0 0
        %307 = vmatpush1.bf16.msra.mxu0 0
        %308 = vmatprep.subr.bf16.mxu0 0
        %309 = vmatpush1.bf16.msra.mxu0 0
        %310 = vmatprep.subr.bf16.mxu0 0
        %311 = vmatpush1.bf16.msra.mxu0 0
        %312 = vmatprep.subr.bf16.mxu0 0
        %313 = vmatpush1.bf16.msra.mxu0 0
        %314 = vmatprep.subr.bf16.mxu0 0
        %315 = vmatpush1.bf16.msra.mxu0 0
        %316 = vmatprep.subr.bf16.mxu0 0
        %317 = vmatpush1.bf16.msra.mxu0 0
        %318 = vmatprep.subr.bf16.mxu0 0
        %319 = vmatpush1.bf16.msra.mxu0 0
        %320 = vmatprep.subr.bf16.mxu0 0
        %321 = vmatpush1.bf16.msra.mxu0 0
        %322 = vmatprep.subr.bf16.mxu0 0
        %323 = vmatpush1.bf16.msra.mxu0 0
        %324 = vmatprep.subr.bf16.mxu0 0
        %325 = vmatpush1.bf16.msra.mxu0 0
        %326 = vmatprep.subr.bf16.mxu0 0
        %327 = vmatpush1.bf16.msra.mxu0 0
        %328 = vmatprep.mubr.bf16.mxu0 0
        %329 = vmatmul.mubr.bf16.gmra.mrb[0].mxu0 %v287
        %v330 = vpop.f32.mrb[0].mxu0
        %v331 = vadd.f32 %v283, %v330
        %v332 = vpop.f32.mrb[0].mxu0
        %v333 = vadd.f32 %v283, %v332
        %v334 = vpop.f32.mrb[0].mxu0
        %v335 = vpop.f32.mrb[0].mxu0
        %336 = vdwg.mxu0
        %v337 = vmax.f32 %v331, 0.0
        %v338 = vmax.f32 %v333, 0.0
        %v339 = vld [vmem:[%s4] sm:$0x3]
        %v340 = vpack.c.bf16 %v337, %v337
        %v341 = vpack.c.bf16 %v338, %v338
        %v342 = vld [vmem:[%s269] sm:$0xf]
        %344 = vset.pattern.permute.xlu0 0
        %345 = vperm.xlu0 %344, %v342
        %v346 = vpop.permute.xlu0 %345
        %vm348 = vcmask 15360
        %v350 = vsel %vm348, %v339, 0
        %vm352 = vcmask 1040384
        %v354 = vsel %vm352, %v340, 0
        %v357 = vsel %vm352, %v341, 0
        %359 = vmatprep.subr.bf16.mxu0 %v357
        %360 = vmatpush1.bf16.msra.mxu0 %v354
        %361 = vmatprep.subr.bf16.mxu0 0
        %362 = vmatpush1.bf16.msra.mxu0 0
        %363 = vmatprep.subr.bf16.mxu0 0
        %364 = vmatpush1.bf16.msra.mxu0 0
        %365 = vmatprep.subr.bf16.mxu0 0
        %366 = vmatpush1.bf16.msra.mxu0 0
        %367 = vmatprep.subr.bf16.mxu0 0
        %368 = vmatpush1.bf16.msra.mxu0 0
        %369 = vmatprep.subr.bf16.mxu0 0
        %370 = vmatpush1.bf16.msra.mxu0 0
        %371 = vmatprep.subr.bf16.mxu0 0
        %372 = vmatpush1.bf16.msra.mxu0 0
        %373 = vmatprep.subr.bf16.mxu0 0
        %374 = vmatpush1.bf16.msra.mxu0 0
        %375 = vmatprep.subr.bf16.mxu0 0
        %376 = vmatpush1.bf16.msra.mxu0 0
        %377 = vmatprep.subr.bf16.mxu0 0
        %378 = vmatpush1.bf16.msra.mxu0 0
        %379 = vmatprep.subr.bf16.mxu0 0
        %380 = vmatpush1.bf16.msra.mxu0 0
        %381 = vmatprep.subr.bf16.mxu0 0
        %382 = vmatpush1.bf16.msra.mxu0 0
        %383 = vmatprep.subr.bf16.mxu0 0
        %384 = vmatpush1.bf16.msra.mxu0 0
        %385 = vmatprep.subr.bf16.mxu0 0
        %386 = vmatpush1.bf16.msra.mxu0 0
        %387 = vmatprep.subr.bf16.mxu0 0
        %388 = vmatpush1.bf16.msra.mxu0 0
        %389 = vmatprep.subr.bf16.mxu0 0
        %390 = vmatpush1.bf16.msra.mxu0 0
        %391 = vmatprep.mubr.bf16.mxu0 0
        %392 = vmatmul.mubr.bf16.gmra.mrb[0].mxu0 %v350
        %v393 = vpop.f32.mrb[0].mxu0
        %v394 = vadd.f32 %v346, %v393
        %v395 = vpop.f32.mrb[0].mxu0
        %v396 = vadd.f32 %v346, %v395
        %v397 = vpop.f32.mrb[0].mxu0
        %v398 = vpop.f32.mrb[0].mxu0
        %399 = vdwg.mxu0
        %v400 = vxor.u32 %v394, 2147483648
        %v401 = vxor.u32 %v396, 2147483648
        %v402 = vmul.f32 %v400, 1.442695
        %v403 = vpow.pop %v402
        %v404 = vmul.f32 %v401, 1.442695
        %v405 = vpow.pop %v404
        %v406 = vadd.f32 %v403, 1.0
        %v407 = vadd.f32 %v405, 1.0
        %v408 = vrcp.pop %v406
        %v409 = vmul.f32 1.0, %v408
        %v410 = vrcp.pop %v407
        %v411 = vmul.f32 1.0, %v410
        %v414 = vcombine.low %v409, %v411
        %v416 = vmul.f32 %v272, %v414
        %417 = vst [vmem:[%s255] sm:$0xff] %v416
        %s418 = sand.u32 %s158, 1
        %s419 = scalar_lea.sflag [#allocation3], %s418
        %s420 = sand.u32 %s158, 1
        %s421 = smul.addr %s420, 8
        %s422 = scalar_lea.vmem [#allocation2], %s421
        // Predicated region
        $region41: #{tpu_custom_call.1} parent=39 // pred_check
          %p423 = pneg %p168
        $region42: #{tpu_custom_call.1} parent=39 // pred_check_branch
          %425 = sbr.rel (%p423) target = $region44
        $region43: #{tpu_custom_call.1} parent=39 // pred_region
          %s426 = smul.u32 2, %s24
          %s428 = ssub.s32 128, 128
          %429 = vsyncadd %s419, %s428
          %s430 = smul.addr %s23, 2
          %s431 = sadd.s32 %s426, %s430
          %s432 = smul.addr %s431, 64
          %s433 = scalar_lea.hbm %s5, %s432
          %s435 = sshll.u32 %s422, 4
          %s436 = int_to_ptr.vmem [resolvable:$true] %s435
          %438 = dma.vmem_to_hbm [thread:$0]  %s436, 128, %s433, %s419
        $region44: #{tpu_custom_call.1} parent=39 // pred_fallthru
          _
      $region40: #{tpu_custom_call.1} parent=5 // pred_fallthru
        _
      %p439 = scmp.le.s32.totalorder 2, %s14
      // Predicated region
      $region45: #{tpu_custom_call.1} parent=5 // pred_check
        %p440 = pneg %p439
      $region46: #{tpu_custom_call.1} parent=5 // pred_check_branch
        %442 = sbr.rel (%p440) target = $region48
      $region47: #{tpu_custom_call.1} parent=5 // pred_region
        %s443 = ssub.s32 %s14, 2
        // Predicated region
        $region49: #{tpu_custom_call.1} parent=47 // pred_check
          %p444 = pneg %p174
        $region50: #{tpu_custom_call.1} parent=47 // pred_check_branch
          %446 = sbr.rel (%p444) target = $region52
        $region51: #{tpu_custom_call.1} parent=47 // pred_region
          %s447 = sand.u32 %s159, 1
          %s448 = scalar_lea.sflag [#allocation3], %s447
          %s449 = sand.u32 %s159, 1
          %s450 = smul.addr %s449, 8
          %s451 = scalar_lea.vmem [#allocation2], %s450
          %452 = dma.done %s448, 128
        $region52: #{tpu_custom_call.1} parent=47 // pred_fallthru
          _
      $region48: #{tpu_custom_call.1} parent=5 // pred_fallthru
        _
    $region6: #{tpu_custom_call.1} parent=1 // loop_footer
      %s18 = sadd.s32 1, %s14
    $region7: #{tpu_custom_call.1} parent=1 // loop_footer_branch
      %13 = sbr.rel target = $region3
    $region8: #{tpu_custom_call.1} parent=1 // loop_exit
      _
    %453 = vsyncpa [#allocation3], 1
    %s454 = scalar_lea.sflag [#allocation3], 1
    %455 = vsyncpa %s454, 1

</llo_original>
